<compile_context>
chip_gen: v7x
topology: tpu7x:2x2x1
jax: 0.10.0
libtpu: 0.0.40
codegen_flags: <defaults>
</compile_context>

<pallas_src>
import jax
import jax.numpy as jnp
from jax import lax
from jax.experimental import pallas as pl
from jax.experimental.pallas import tpu as pltpu


LANE = 128
SUBLANE_STEP = 16          # bf16 packs two rows per sublane -> step tiles by 16


def _round_up(x, m):
    return ((x + m - 1) // m) * m


# ----------------------------------------------------------------------------
# Kernels
# ----------------------------------------------------------------------------
def kv_pool_kernel(x_ref, w_kv_ref, kv_ref):
    """x_ref: (1, 4, TP, CP) pool-offset-major; w_kv_ref: (CP, DKVP);
    kv_ref: (1, TP, DKVP).  Fused phi|g projection + 2x2 max-pool.

    One long-M matmul over all 4 pool offsets, then one VPU max-reduce."""
    _, four, tp, cp = x_ref.shape
    dkvp = w_kv_ref.shape[1]
    dt = w_kv_ref.dtype
    x = x_ref[...].reshape(four * tp, cp)                      # (4*TP, CP)
    proj = jnp.dot(x.astype(dt), w_kv_ref[...],
                   preferred_element_type=jnp.float32)         # (4*TP, DKVP)
    pooled = jnp.max(proj.reshape(four, tp, dkvp), axis=0)     # (TP, DKVP)
    kv_ref[0] = pooled.astype(kv_ref.dtype)


def attn_query_kernel(x_ref, wt_ref, wo_ref, kv_ref, gamma_ref, o_ref):
    """x_ref: (1, TQ, CP); wt_ref: (CP, C8P); wo_ref: (C2P, CP);
    kv_ref: (1, N/4, C8P + C2P); gamma_ref: (1, 1) SMEM; o_ref: (1, TQ, CP).
    CP / C8P / C2P are zero-padded to multiples of 128 (lane-aligned)."""
    c8p = wt_ref.shape[1]
    dt = wt_ref.dtype

    x = x_ref[0]                                               # (TQ, CP) f32 residual
    theta = jnp.dot(x.astype(dt), wt_ref[...],
                    preferred_element_type=jnp.float32)        # (TQ, C8P)

    kv = kv_ref[0]                                             # (N/4, C8P + C2P)
    phi_p = kv[:, :c8p]                                        # 128-aligned slice
    g_p = kv[:, c8p:]                                          # 128-aligned slice

    # scores = theta @ phi_p^T — transpose absorbed by the MXU (contract last axes).
    scores = lax.dot_general(theta.astype(dt), phi_p,
                             (((1,), (1,)), ((), ())),
                             preferred_element_type=jnp.float32)  # (TQ, N/4)

    # f32 softmax with deferred, EXACT normalization (only the (TQ, C2P) result
    # is scaled; the previous approx reciprocal broke f32-path parity).
    m = jnp.max(scores, axis=-1, keepdims=True)
    p = jnp.exp(scores - m)
    denom = jnp.sum(p, axis=-1, keepdims=True)

    o_mid = jnp.dot(p.astype(dt), g_p,
                    preferred_element_type=jnp.float32)        # (TQ, C2P) unnormalized
    o_mid = o_mid / denom

    o = jnp.dot(o_mid.astype(dt), wo_ref[...],
                preferred_element_type=jnp.float32)            # (TQ, CP)

    gamma = gamma_ref[0, 0]
    o_ref[0] = (gamma * o + x).astype(o_ref.dtype)


# ----------------------------------------------------------------------------
# Layout helpers (plain-JAX glue)
# ----------------------------------------------------------------------------
def _to_pool_major(x):
    # (B, C, H, W) -> (B, N, C), row ordering = pool-offset-major.
    B, C, H, W = x.shape
    H2, W2 = H // 2, W // 2
    x = x.reshape(B, C, H2, 2, W2, 2)
    x = x.transpose(0, 3, 5, 2, 4, 1)            # (B, dh, dw, ph, pw, C)
    return x.reshape(B, H * W, C)


def _from_pool_major(y, C, H, W):
    # inverse of _to_pool_major: (B, N, C) -> (B, C, H, W)
    B = y.shape[0]
    H2, W2 = H // 2, W // 2
    y = y.reshape(B, 2, 2, H2, W2, C)
    y = y.transpose(0, 5, 3, 1, 4, 2)            # (B, C, ph, dh, pw, dw)
    return y.reshape(B, C, H, W)


def _vmem_capacity_bytes():
    try:
        return int(pltpu.get_tpu_info().vmem_capacity_bytes)
    except Exception:
        return 128 << 20


def _tile_candidates(n, target, step):
    cands = [t for t in range(step, min(n, target) + 1, step) if n % t == 0]
    if n <= target and n not in cands:
        cands.append(n)                          # full extent is always legal
    if not cands:
        cands = [n]
    return sorted(set(cands), reverse=True)


def _choose_tile(n, target, footprint_fn, budget, step=SUBLANE_STEP):
    """Largest tile <= target dividing n (multiple of `step`, else n itself)
    whose estimated per-step VMEM footprint fits `budget`."""
    cands = _tile_candidates(n, target, step)
    for t in cands:
        if footprint_fn(t) <= budget:
            return t
    return cands[-1]


def _vmem_limit(footprint, cap):
    limit = min(max(int(footprint * 1.4), 32 << 20), int(cap * 0.9))
    return max(limit, int(footprint * 1.1))


# ----------------------------------------------------------------------------
# Forward wrapper
# ----------------------------------------------------------------------------
def attention_forward(x, w_theta, w_phi, w_g, w_o, gamma, *,
                      matmul_dtype=jnp.bfloat16, query_tile=None):
    """x: (B, C, H, W) NCHW.  1x1-conv weights as (out_ch, in_ch) matrices
    (kernel_size=1, bias=False).  MXU operands use `matmul_dtype` (bf16 by
    default, f32 accumulation); softmax and residual stay f32."""
    B, C, H, W = x.shape
    assert H % 2 == 0 and W % 2 == 0, "2x2 max-pool requires even H, W"
    N = H * W
    N4 = N // 4
    C8, C2 = C // 8, C // 2

    # Lane-aligned (128-multiple) padded widths for every matmul / store.
    CP = _round_up(C, LANE)
    C8P = _round_up(C8, LANE)
    C2P = _round_up(C2, LANE)
    DKVP = C8P + C2P
    dt_bytes = jnp.dtype(matmul_dtype).itemsize

    x_perm = _to_pool_major(x)                    # (B, N, C), keep input dtype (f32)
    if CP != C:
        x_perm = jnp.pad(x_perm, ((0, 0), (0, 0), (0, CP - C)))
    x_kv = x_perm.reshape(B, 4, N4, CP)           # pool-offset as its own axis

    # 1x1 convs as zero-padded (in, out) matrices; phi|g fused, phi block first
    # so both slices inside the kernel are 128-lane aligned.
    wt = jnp.pad(jnp.transpose(w_theta),
                 ((0, CP - C), (0, C8P - C8))).astype(matmul_dtype)        # (CP, C8P)
    w_kv = jnp.concatenate(
        [jnp.pad(jnp.transpose(w_phi), ((0, CP - C), (0, C8P - C8))),
         jnp.pad(jnp.transpose(w_g), ((0, CP - C), (0, C2P - C2)))],
        axis=1).astype(matmul_dtype)                                       # (CP, DKVP)
    wo = jnp.pad(jnp.transpose(w_o),
                 ((0, C2P - C2), (0, CP - C))).astype(matmul_dtype)        # (C2P, CP)
    gamma_arr = jnp.reshape(jnp.asarray(gamma, jnp.float32), (1, 1))

    vmem_cap = _vmem_capacity_bytes()
    budget = int(vmem_cap * 0.7)

    # ---- pass 1: pooled phi|g ("KV") ---------------------------------------
    def p1_footprint(tp):
        return (2 * 4 * tp * CP * 4              # x block (f32), double-buffered
                + 2 * CP * DKVP * dt_bytes       # fused weight
                + 2 * tp * DKVP * dt_bytes       # kv out, double-buffered
                + 4 * tp * DKVP * 4)             # f32 projection before the max

    tp_target = 1024 if vmem_cap >= (96 << 20) else 512
    tp = _choose_tile(N4, tp_target, p1_footprint, budget)
    kv = pl.pallas_call(
        kv_pool_kernel,
        out_shape=jax.ShapeDtypeStruct((B, N4, DKVP), matmul_dtype),
        grid=(B, N4 // tp),
        in_specs=[
            pl.BlockSpec((1, 4, tp, CP), lambda b, p: (b, 0, p, 0)),
            pl.BlockSpec((CP, DKVP), lambda b, p: (0, 0)),
        ],
        out_specs=pl.BlockSpec((1, tp, DKVP), lambda b, p: (b, p, 0)),
        compiler_params=pltpu.CompilerParams(
            dimension_semantics=("parallel", "parallel"),
            vmem_limit_bytes=_vmem_limit(p1_footprint(tp), vmem_cap)),
    )(x_kv, w_kv)

    # ---- pass 2: flash-style query tiling ----------------------------------
    def p2_footprint(tq):
        return (2 * tq * CP * 4                  # x residual tile (f32), 2-buffered
                + 2 * tq * CP * 4                # output tile (f32), 2-buffered
                + 2 * CP * C8P * dt_bytes        # wt (resident)
                + 2 * C2P * CP * dt_bytes        # wo (resident)
                + 2 * N4 * DKVP * dt_bytes       # kv (resident per image)
                + 2 * tq * N4 * 4                # scores + exp (f32)
                + tq * N4 * dt_bytes             # exp cast for the PV matmul
                + tq * (C8P + C2P + CP) * 4)     # theta / o_mid / o temporaries

    tq_target = query_tile if query_tile is not None else 512
    tq = _choose_tile(N, tq_target, p2_footprint, budget)

    out_perm = pl.pallas_call(
        attn_query_kernel,
        out_shape=jax.ShapeDtypeStruct((B, N, CP), x.dtype),
        grid=(B, N // tq),   # query axis innermost: constant-index weights / kv
        in_specs=[           # are fetched once per image, not per tile.
            pl.BlockSpec((1, tq, CP), lambda b, q: (b, q, 0)),
            pl.BlockSpec((CP, C8P), lambda b, q: (0, 0)),
            pl.BlockSpec((C2P, CP), lambda b, q: (0, 0)),
            pl.BlockSpec((1, N4, DKVP), lambda b, q: (b, 0, 0)),
            pl.BlockSpec(memory_space=pltpu.MemorySpace.SMEM),
        ],
        out_specs=pl.BlockSpec((1, tq, CP), lambda b, q: (b, q, 0)),
        compiler_params=pltpu.CompilerParams(
            dimension_semantics=("parallel", "parallel"),
            vmem_limit_bytes=_vmem_limit(p2_footprint(tq), vmem_cap)),
    )(x_perm, wt, wo, kv, gamma_arr)

    if CP != C:
        out_perm = out_perm[..., :C]             # drop the lane padding
    return _from_pool_major(out_perm, C, H, W)


# ----------------------------------------------------------------------------
# Pure-JAX reference (mirrors the PyTorch forward, NCHW)
# ----------------------------------------------------------------------------
def attention_reference(x, w_theta, w_phi, w_g, w_o, gamma):
    B, C, H, W = x.shape
    C8, C2 = C // 8, C // 2
    N = H * W
    hp = lax.Precision.HIGHEST

    def conv1x1(t, w):
        return jnp.einsum('oc,bchw->bohw', w, t, precision=hp)

    def maxpool2(t):
        b, o, h, w = t.shape
        return jnp.max(t.reshape(b, o, h // 2, 2, w // 2, 2), axis=(3, 5))

    theta = conv1x1(x, w_theta).reshape(B, C8, N)
    phi = maxpool2(conv1x1(x, w_phi)).reshape(B, C8, N // 4)
    g = maxpool2(conv1x1(x, w_g)).reshape(B, C2, N // 4)
    beta = jax.nn.softmax(jnp.einsum('bcn,bcm->bnm', theta, phi, precision=hp),
                          axis=-1)
    o = jnp.einsum('bcm,bnm->bcn', g, beta, precision=hp).reshape(B, C2, H, W)
    o = conv1x1(o, w_o)
    return gamma * o + x


if __name__ == "__main__":
    B, C, H, W = 2, 32, 8, 8          # ch=32 -> ch//8=4, ch//2=16
    key = jax.random.PRNGKey(0)
    k1, k2, k3, k4, k5 = jax.random.split(key, 5)
    x = jax.random.normal(k1, (B, C, H, W), jnp.float32)
    # spectral_norm=False; deterministic synthetic conv weights (out_ch, in_ch).
    w_theta = 0.1 * jax.random.normal(k2, (C // 8, C), jnp.float32)
    w_phi = 0.1 * jax.random.normal(k3, (C // 8, C), jnp.float32)
    w_g = 0.1 * jax.random.normal(k4, (C // 2, C), jnp.float32)
    w_o = 0.1 * jax.random.normal(k5, (C, C // 2), jnp.float32)
    gamma0 = jnp.float32(0.0)         # matches module __init__ (gamma = 0.0)

    out = attention_forward(x, w_theta, w_phi, w_g, w_o, gamma0)
    jax.block_until_ready(out)

    # gamma=1.0 exercises the full attention path; gamma=0.0 checks the residual.
    for gval in (0.0, 1.0):
        ref = attention_reference(x, w_theta, w_phi, w_g, w_o, jnp.float32(gval))
        # f32 MXU-operand path.  Tolerance accounts for platform/default-precision
        # differences between the in-kernel dots and the HIGHEST-precision reference.
        got32 = attention_forward(x, w_theta, w_phi, w_g, w_o, jnp.float32(gval),
                                  matmul_dtype=jnp.float32)
        err32 = float(jnp.max(jnp.abs(got32 - ref)))
        assert jnp.allclose(got32, ref, atol=2e-2, rtol=2e-2), err32
        # Default bf16-operand path (f32 softmax/residual): looser tolerance.
        got16 = attention_forward(x, w_theta, w_phi, w_g, w_o, jnp.float32(gval))
        err16 = float(jnp.max(jnp.abs(got16 - ref)))
        assert jnp.allclose(got16, ref, atol=5e-2, rtol=5e-2), err16

    print("KERNEL_OK")
</pallas_src>

<mosaic_0001>
module attributes {stable_mosaic.version = 11 : i64} {
  func.func @kv_pool_kernel(%arg0: i32, %arg1: i32, %arg2: memref<1x4x16x128xf32, #tpu.memory_space<vmem>>, %arg3: memref<128x256xbf16, #tpu.memory_space<vmem>>, %arg4: memref<1x16x256xbf16, #tpu.memory_space<vmem>>) attributes {dimension_semantics = [#tpu.dimension_semantics<parallel>, #tpu.dimension_semantics<parallel>], iteration_bounds = array<i64: 2, 1>, scalar_prefetch = 0 : i64, scratch_operands = 0 : i64, tpu.core_type = #tpu.core_type<tc>, window_params = [{transform_indices = @transform_0, window_bounds = array<i64: 1, 4, 16, 128>}, {pipeline_mode = #tpu.pipeline_mode<synchronous>, transform_indices = @transform_1, window_bounds = array<i64: 128, 256>}, {transform_indices = @transform_2, window_bounds = array<i64: 1, 16, 256>}]} {
    %c0 = arith.constant 0 : index
    %c0_0 = arith.constant 0 : index
    %c0_1 = arith.constant 0 : index
    %c0_2 = arith.constant 0 : index
    %0 = vector.load %arg2[%c0, %c0_0, %c0_1, %c0_2] : memref<1x4x16x128xf32, #tpu.memory_space<vmem>>, vector<1x4x16x128xf32>
    %1 = vector.shape_cast %0 : vector<1x4x16x128xf32> to vector<64x128xf32>
    %2 = arith.truncf %1 : vector<64x128xf32> to vector<64x128xbf16>
    %c0_3 = arith.constant 0 : index
    %c0_4 = arith.constant 0 : index
    %3 = vector.load %arg3[%c0_3, %c0_4] : memref<128x256xbf16, #tpu.memory_space<vmem>>, vector<128x256xbf16>
    %cst = arith.constant dense<0.000000e+00> : vector<64x256xf32>
    %4 = tpu.matmul %2, %3, %cst {dimension_numbers = #tpu.dot_dimension_numbers<[1], [0], [0], [1], [0, 0, 1, 1], [], []>} : vector<64x128xbf16>, vector<128x256xbf16>, vector<64x256xf32> -> vector<64x256xf32>
    %5 = vector.shape_cast %4 : vector<64x256xf32> to vector<4x16x256xf32>
    %cst_5 = arith.constant dense<0xFF800000> : vector<16x256xf32>
    %6 = vector.multi_reduction <maximumf>, %5, %cst_5 [0] : vector<4x16x256xf32> to vector<16x256xf32>
    %7 = arith.truncf %6 : vector<16x256xf32> to vector<16x256xbf16>
    %c0_6 = arith.constant 0 : index
    %c0_7 = arith.constant 0 : index
    %c0_8 = arith.constant 0 : index
    %8 = vector.load %arg4[%c0_6, %c0_7, %c0_8] : memref<1x16x256xbf16, #tpu.memory_space<vmem>>, vector<1x16x256xbf16>
    %9 = vector.shape_cast %8 : vector<1x16x256xbf16> to vector<16x256xbf16>
    %10 = vector.shape_cast %7 : vector<16x256xbf16> to vector<1x16x256xbf16>
    tpu.vector_store %arg4[%c0_6, %c0_7, %c0_8], %10 {strides = array<i32>} : memref<1x16x256xbf16, #tpu.memory_space<vmem>>, vector<1x16x256xbf16>,
    return
  }
  func.func @transform_0(%arg0: i32, %arg1: i32) -> (i32, i32, i32, i32) {
    %c0_i32 = arith.constant 0 : i32
    %c0_i32_0 = arith.constant 0 : i32
    %c0_i32_1 = arith.constant 0 : i32
    return %arg0, %c0_i32, %arg1, %c0_i32_0 : i32, i32, i32, i32
  }
  func.func @transform_1(%arg0: i32, %arg1: i32) -> (i32, i32) {
    %c0_i32 = arith.constant 0 : i32
    %c0_i32_0 = arith.constant 0 : i32
    %c0_i32_1 = arith.constant 0 : i32
    return %c0_i32, %c0_i32_0 : i32, i32
  }
  func.func @transform_2(%arg0: i32, %arg1: i32) -> (i32, i32, i32) {
    %c0_i32 = arith.constant 0 : i32
    %c0_i32_0 = arith.constant 0 : i32
    return %arg0, %arg1, %c0_i32 : i32, i32, i32
  }
}

</mosaic_0001>

<llo_original>
// kernel: tpu_custom_call.1
$region0: #{tpu_custom_call.1}
  #allocation0 [shape = 'u32[]', space=smem, size = 0x4, offset = 0x4, fixed_abs, tag = 'smem constant byte address 0x4 - core index']
  #allocation1 [shape = 'u32[144,128]{1,0:T(1,128)}', space=vmem, size = 0x12000, scoped, tag = 'internal scratch']
  %s0 = inlined_call_operand.hbm [shape: f32[2,4,16,128], index: 0, kind: input, shape index: {}]
  %s1 = inlined_call_operand.hbm [shape: bf16[128,256], index: 1, kind: input, shape index: {}]
  %s2 = inlined_call_operand.hbm [shape: bf16[2,16,256], index: 2, kind: output, shape index: {}]
  %s3 = sld [smem:[#allocation0]]
  $region49: #{tpu_custom_call.1} parent=0
    _
  %s5 = ssub.s32 1, %s3
  %s6 = scalar_select 0, %s5, %s3
  $region1: #{tpu_custom_call.1} parent=0
    #allocation2 [shape = 'u8[65536]{0}', space=vmem, size = 0x10000, scoped, tag = 'input window, operand 0']
    #allocation3 [shape = 's32[2]{0}', space=sflag, size = 0x8, scoped, tag = 'scoped memory for tpu_custom_call.1']
    #allocation4 [shape = 's32[2]{0}', space=sflag, size = 0x8, scoped, tag = 'scoped memory for tpu_custom_call.1']
    #allocation5 [shape = 'u8[65536]{0}', space=vmem, size = 0x10000, scoped, tag = 'input window, operand 1, single buffered']
    #allocation6 [shape = 's32[1]{0}', space=sflag, size = 0x4, scoped, tag = 'scoped memory for tpu_custom_call.1']
    #allocation7 [shape = 'u8[16384]{0}', space=vmem, size = 0x4000, scoped, tag = 'output window, operand 0']
    %7 = vsyncpa [#allocation3], 0
    %s8 = scalar_lea.sflag [#allocation3], 1
    %9 = vsyncpa %s8, 0
    %10 = vsyncpa [#allocation6], 0
    %11 = vsyncpa [#allocation4], 0
    %s12 = scalar_lea.sflag [#allocation4], 1
    %13 = vsyncpa %s12, 0
    loop: start=0, step=1, limit=4
    $region2: #{tpu_custom_call.1} parent=1 // loop_pre_header
      _
    $region3: #{tpu_custom_call.1} parent=1 // loop_header
      %s15 = sphi 0, %s19
      %p16 = scmp.ge.s32.totalorder %s15, 4
      %s22 = sphi 0, %s34
      %s23 = sphi 0, %s30
      %s24 = sphi 0, %s22
      %s25 = sphi 0, %s23
      %s26 = sphi 0, %s24
      %s27 = sphi 0, %s25
      %s39 = sphi 0, %s41
      %s42 = sphi 0, %s39
      %s43 = sphi 0, %s42
      %s59 = sphi 0, %s43
      %s63 = sphi 0, %s63
      %s65 = sphi 0, %s63
      %s66 = sphi 0, %s65
      %s80 = sphi 0, %s66
      %s88 = sphi 0, %s90
      %s91 = sphi 0, %s88
      %s92 = sphi 0, %s91
      %s108 = sphi 0, %s92
    $region4: #{tpu_custom_call.1} parent=1 // loop_header_branch
      %18 = sbr.rel (%p16) target = $region8
    $region5: #{tpu_custom_call.1} parent=1 // loop_body
      %s20 = ssub.s32 %s15, 1
      %s21 = ssub.s32 %s15, 2
      %s28 = sadd.s32 1, %s23
      %p29 = scmp.ge.s32.totalorder %s28, 1
      %s30 = scalar_select %p29, 0, %s28
      %s31 = sadd.s32 1, %s22
      %s32 = scalar_select %p29, %s31, %s22
      %p33 = scmp.ge.s32.totalorder %s32, 2
      %s34 = scalar_select %p33, 0, %s32
      %s35 = ssub.s32 %s22, %s34
      %s36 = ssub.s32 %s23, %s30
      %s37 = sor.u32 %s35, %s36
      %p38 = scmp.eq.s32.totalorder %s37, 0
      %s40 = sadd.s32 %s39, 1
      %s41 = scalar_select %p38, %s39, %s40
      %p44 = pneg %p38
      %p45 = scmp.eq.s32.totalorder %s15, 1
      %p46 = por %p44, %p45
      %p47 = scmp.ne.s32.totalorder %s39, %s42
      %p48 = scmp.eq.s32.totalorder %s15, 0
      %p49 = por %p47, %p48
      %p50 = scmp.ne.s32.totalorder %s39, %s42
      %p51 = scmp.eq.s32.totalorder %s20, 1
      %p52 = por %p50, %p51
      %p53 = scmp.ne.s32.totalorder %s42, %s43
      %p54 = scmp.eq.s32.totalorder %s20, 0
      %p55 = por %p53, %p54
      %p56 = scmp.ne.s32.totalorder %s42, %s43
      %p57 = scmp.eq.s32.totalorder %s21, 1
      %p58 = por %p56, %p57
      %p60 = scmp.ne.s32.totalorder %s43, %s59
      %p61 = scmp.eq.s32.totalorder %s21, 0
      %p62 = por %p60, %p61
      %s64 = sadd.s32 %s63, 1
      %p67 = scmp.eq.s32.totalorder %s15, 1
      %p68 = scmp.ne.s32.totalorder %s63, %s65
      %p69 = scmp.eq.s32.totalorder %s15, 0
      %p70 = por %p68, %p69
      %p71 = scmp.ne.s32.totalorder %s63, %s65
      %p72 = scmp.eq.s32.totalorder %s20, 1
      %p73 = por %p71, %p72
      %p74 = scmp.ne.s32.totalorder %s65, %s66
      %p75 = scmp.eq.s32.totalorder %s20, 0
      %p76 = por %p74, %p75
      %p77 = scmp.ne.s32.totalorder %s65, %s66
      %p78 = scmp.eq.s32.totalorder %s21, 1
      %p79 = por %p77, %p78
      %p81 = scmp.ne.s32.totalorder %s66, %s80
      %p82 = scmp.eq.s32.totalorder %s21, 0
      %p83 = por %p81, %p82
      %s84 = ssub.s32 %s22, %s34
      %s85 = ssub.s32 %s23, %s30
      %s86 = sor.u32 %s84, %s85
      %p87 = scmp.eq.s32.totalorder %s86, 0
      %s89 = sadd.s32 %s88, 1
      %s90 = scalar_select %p87, %s88, %s89
      %p93 = pneg %p87
      %p94 = scmp.eq.s32.totalorder %s15, 1
      %p95 = por %p93, %p94
      %p96 = scmp.ne.s32.totalorder %s88, %s91
      %p97 = scmp.eq.s32.totalorder %s15, 0
      %p98 = por %p96, %p97
      %p99 = scmp.ne.s32.totalorder %s88, %s91
      %p100 = scmp.eq.s32.totalorder %s20, 1
      %p101 = por %p99, %p100
      %p102 = scmp.ne.s32.totalorder %s91, %s92
      %p103 = scmp.eq.s32.totalorder %s20, 0
      %p104 = por %p102, %p103
      %p105 = scmp.ne.s32.totalorder %s91, %s92
      %p106 = scmp.eq.s32.totalorder %s21, 1
      %p107 = por %p105, %p106
      %p109 = scmp.ne.s32.totalorder %s92, %s108
      %p110 = scmp.eq.s32.totalorder %s21, 0
      %p111 = por %p109, %p110
      %p112 = scmp.le.s32.totalorder 1, %s15
      %p113 = scmp.lt.s32.totalorder %s15, 3
      %p114 = pnand %p112, %p113
      %p115 = pneg %p114
      // Predicated region
      $region9: #{tpu_custom_call.1} parent=5 // pred_check
        _
      $region10: #{tpu_custom_call.1} parent=5 // pred_check_branch
        %117 = sbr.rel (%p114) target = $region12
      $region11: #{tpu_custom_call.1} parent=5 // pred_region
        %s118 = ssub.s32 %s15, 1
        // Predicated region
        $region13: #{tpu_custom_call.1} parent=11 // pred_check
          %p119 = pneg %p76
        $region14: #{tpu_custom_call.1} parent=11 // pred_check_branch
          %121 = sbr.rel (%p119) target = $region16
        $region15: #{tpu_custom_call.1} parent=11 // pred_region
          %s123 = ssub.s32 2048, 2048
          %124 = vsyncadd [#allocation6], %s123
          %s125 = sshll.u32 [#allocation5], 4
          %s126 = int_to_ptr.vmem [resolvable:$true] %s125
          %131 = dma.hbm_to_vmem [thread:$0]  %s1, 2048, %s126, [#allocation6], 128, 128, 8
        $region16: #{tpu_custom_call.1} parent=11 // pred_fallthru
          _
      $region12: #{tpu_custom_call.1} parent=5 // pred_fallthru
        _
      %p132 = scmp.lt.s32.totalorder %s15, 2
      // Predicated region
      $region17: #{tpu_custom_call.1} parent=5 // pred_check
        %p133 = pneg %p132
      $region18: #{tpu_custom_call.1} parent=5 // pred_check_branch
        %135 = sbr.rel (%p133) target = $region20
      $region19: #{tpu_custom_call.1} parent=5 // pred_region
        // Predicated region
        $region21: #{tpu_custom_call.1} parent=19 // pred_check
          %p136 = pneg %p49
        $region22: #{tpu_custom_call.1} parent=19 // pred_check_branch
          %138 = sbr.rel (%p136) target = $region24
        $region23: #{tpu_custom_call.1} parent=19 // pred_region
          %s139 = sand.u32 %s39, 1
          %s140 = scalar_lea.sflag [#allocation3], %s139
          %s141 = sand.u32 %s39, 1
          %s142 = smul.addr %s141, 64
          %s143 = scalar_lea.vmem [#allocation2], %s142
          %s144 = smul.u32 2, %s23
          %s146 = ssub.s32 1024, 1024
          %147 = vsyncadd %s140, %s146
          %s148 = smul.addr %s22, 8
          %s149 = sadd.s32 %s144, %s148
          %s150 = smul.addr %s149, 128
          %s151 = scalar_lea.hbm %s0, %s150
          %s152 = sshll.u32 %s143, 4
          %s153 = int_to_ptr.vmem [resolvable:$true] %s152
          %158 = dma.hbm_to_vmem [thread:$0]  %s151, 1024, %s153, %s140, 128, 128, 8
        $region24: #{tpu_custom_call.1} parent=19 // pred_fallthru
          _
      $region20: #{tpu_custom_call.1} parent=5 // pred_fallthru
        _
      %p159 = scmp.le.s32.totalorder 1, %s15
      %p160 = scmp.lt.s32.totalorder %s15, 3
      %p161 = pnand %p159, %p160
      %p162 = pneg %p161
      // Predicated region
      $region25: #{tpu_custom_call.1} parent=5 // pred_check
        _
      $region26: #{tpu_custom_call.1} parent=5 // pred_check_branch
        %164 = sbr.rel (%p161) target = $region28
      $region27: #{tpu_custom_call.1} parent=5 // pred_region
        %s165 = ssub.s32 %s15, 1
        %s166 = sand.u32 %s42, 1
        %s167 = scalar_lea.sflag [#allocation3], %s166
        %s168 = sand.u32 %s42, 1
        %s169 = smul.addr %s168, 64
        %s170 = scalar_lea.vmem [#allocation2], %s169
        // Predicated region
        $region29: #{tpu_custom_call.1} parent=27 // pred_check
          %p171 = pneg %p55
        $region30: #{tpu_custom_call.1} parent=27 // pred_check_branch
          %173 = sbr.rel (%p171) target = $region32
        $region31: #{tpu_custom_call.1} parent=27 // pred_region
          %174 = dma.done %s167, 1024
        $region32: #{tpu_custom_call.1} parent=27 // pred_fallthru
          _
        // Predicated region
        $region33: #{tpu_custom_call.1} parent=27 // pred_check
          %p175 = pneg %p76
        $region34: #{tpu_custom_call.1} parent=27 // pred_check_branch
          %177 = sbr.rel (%p175) target = $region36
        $region35: #{tpu_custom_call.1} parent=27 // pred_region
          %178 = dma.done [#allocation6], 2048
        $region36: #{tpu_custom_call.1} parent=27 // pred_fallthru
          _
        %s179 = sand.u32 %s42, 1
        %s180 = scalar_lea.sflag [#allocation3], %s179
        %s181 = sand.u32 %s42, 1
        %s182 = smul.addr %s181, 64
        %s183 = scalar_lea.vmem [#allocation2], %s182
        %p184 = pneg %p55
        %p185 = pneg %p52
        %p186 = pneg %p76
        %p187 = pneg %p73
        %p188 = pneg %p104
        %p189 = pneg %p101
        %s190 = sand.u32 %s91, 1
        %s191 = scalar_lea.sflag [#allocation4], %s190
        %s192 = sand.u32 %s91, 1
        %s193 = smul.addr %s192, 16
        %s194 = scalar_lea.vmem [#allocation7], %s193
        %s195 = smul.u32 2, %s25
        %s196 = smul.u32 2, %s25
        %v198 = vld [vmem:[%s170] sm:$0xff]
        %v199 = vld [vmem:[%s170 + $0x8] sm:$0xff]
        %v200 = vld [vmem:[%s170 + $0x10] sm:$0xff]
        %v201 = vld [vmem:[%s170 + $0x18] sm:$0xff]
        %v202 = vld [vmem:[%s170 + $0x20] sm:$0xff]
        %v203 = vld [vmem:[%s170 + $0x28] sm:$0xff]
        %v204 = vld [vmem:[%s170 + $0x30] sm:$0xff]
        %v205 = vld [vmem:[%s170 + $0x38] sm:$0xff]
        %v206 = vpack.c.bf16 %v199, %v198
        %v207 = vpack.c.bf16 %v201, %v200
        %v208 = vpack.c.bf16 %v203, %v202
        %v209 = vpack.c.bf16 %v205, %v204
        %v210 = vld [vmem:[#allocation5] sm:$0xff]
        %v211 = vld [vmem:[#allocation5 + $0x8] sm:$0xff]
        %v212 = vld [vmem:[#allocation5 + $0x10] sm:$0xff]
        %v213 = vld [vmem:[#allocation5 + $0x18] sm:$0xff]
        %v214 = vld [vmem:[#allocation5 + $0x20] sm:$0xff]
        %v215 = vld [vmem:[#allocation5 + $0x28] sm:$0xff]
        %v216 = vld [vmem:[#allocation5 + $0x30] sm:$0xff]
        %v217 = vld [vmem:[#allocation5 + $0x38] sm:$0xff]
        %v218 = vld [vmem:[#allocation5 + $0x40] sm:$0xff]
        %v219 = vld [vmem:[#allocation5 + $0x48] sm:$0xff]
        %v220 = vld [vmem:[#allocation5 + $0x50] sm:$0xff]
        %v221 = vld [vmem:[#allocation5 + $0x58] sm:$0xff]
        %v222 = vld [vmem:[#allocation5 + $0x60] sm:$0xff]
        %v223 = vld [vmem:[#allocation5 + $0x68] sm:$0xff]
        %v224 = vld [vmem:[#allocation5 + $0x70] sm:$0xff]
        %v225 = vld [vmem:[#allocation5 + $0x78] sm:$0xff]
        %v242 = vunpack.c.l.b16 %v210
        %v243 = vunpack.c.h.b16 %v210
        %v244 = vunpack.c.l.b16 %v211
        %v245 = vunpack.c.h.b16 %v211
        %v246 = vunpack.c.l.b16 %v212
        %v247 = vunpack.c.h.b16 %v212
        %v248 = vunpack.c.l.b16 %v213
        %v249 = vunpack.c.h.b16 %v213
        %v250 = vunpack.c.l.b16 %v214
        %v251 = vunpack.c.h.b16 %v214
        %v252 = vunpack.c.l.b16 %v215
        %v253 = vunpack.c.h.b16 %v215
        %v254 = vunpack.c.l.b16 %v216
        %v255 = vunpack.c.h.b16 %v216
        %v256 = vunpack.c.l.b16 %v217
        %v257 = vunpack.c.h.b16 %v217
        %v258 = vunpack.c.l.b16 %v218
        %v259 = vunpack.c.h.b16 %v218
        %v260 = vunpack.c.l.b16 %v219
        %v261 = vunpack.c.h.b16 %v219
        %v262 = vunpack.c.l.b16 %v220
        %v263 = vunpack.c.h.b16 %v220
        %v264 = vunpack.c.l.b16 %v221
        %v265 = vunpack.c.h.b16 %v221
        %v266 = vunpack.c.l.b16 %v222
        %v267 = vunpack.c.h.b16 %v222
        %v268 = vunpack.c.l.b16 %v223
        %v269 = vunpack.c.h.b16 %v223
        %v270 = vunpack.c.l.b16 %v224
        %v271 = vunpack.c.h.b16 %v224
        %v272 = vunpack.c.l.b16 %v225
        %v273 = vunpack.c.h.b16 %v225
        %v274 = vpack.c.b16 %v244, %v242
        %v275 = vpack.c.b16 %v245, %v243
        %v276 = vpack.c.b16 %v248, %v246
        %v277 = vpack.c.b16 %v249, %v247
        %v278 = vpack.c.b16 %v252, %v250
        %v279 = vpack.c.b16 %v253, %v251
        %v280 = vpack.c.b16 %v256, %v254
        %v281 = vpack.c.b16 %v257, %v255
        %v282 = vpack.c.b16 %v260, %v258
        %v283 = vpack.c.b16 %v261, %v259
        %v284 = vpack.c.b16 %v264, %v262
        %v285 = vpack.c.b16 %v265, %v263
        %v286 = vpack.c.b16 %v268, %v266
        %v287 = vpack.c.b16 %v269, %v267
        %v288 = vpack.c.b16 %v272, %v270
        %v289 = vpack.c.b16 %v273, %v271
        %306 = vmatprep.subr.bf16.mxu0 %v275
        %307 = vmatpush1.bf16.msra.mxu0 %v274
        %308 = vmatprep.subr.bf16.mxu0 %v277
        %309 = vmatpush1.bf16.msra.mxu0 %v276
        %310 = vmatprep.subr.bf16.mxu0 %v279
        %311 = vmatpush1.bf16.msra.mxu0 %v278
        %312 = vmatprep.subr.bf16.mxu0 %v281
        %313 = vmatpush1.bf16.msra.mxu0 %v280
        %314 = vmatprep.subr.bf16.mxu0 %v283
        %315 = vmatpush1.bf16.msra.mxu0 %v282
        %316 = vmatprep.subr.bf16.mxu0 %v285
        %317 = vmatpush1.bf16.msra.mxu0 %v284
        %318 = vmatprep.subr.bf16.mxu0 %v287
        %319 = vmatpush1.bf16.msra.mxu0 %v286
        %320 = vmatprep.subr.bf16.mxu0 %v289
        %321 = vmatpush1.bf16.msra.mxu0 %v288
        %322 = vmatprep.subr.bf16.mxu0 0
        %323 = vmatpush1.bf16.msra.mxu0 0
        %324 = vmatprep.subr.bf16.mxu0 0
        %325 = vmatpush1.bf16.msra.mxu0 0
        %326 = vmatprep.subr.bf16.mxu0 0
        %327 = vmatpush1.bf16.msra.mxu0 0
        %328 = vmatprep.subr.bf16.mxu0 0
        %329 = vmatpush1.bf16.msra.mxu0 0
        %330 = vmatprep.subr.bf16.mxu0 0
        %331 = vmatpush1.bf16.msra.mxu0 0
        %332 = vmatprep.subr.bf16.mxu0 0
        %333 = vmatpush1.bf16.msra.mxu0 0
        %334 = vmatprep.subr.bf16.mxu0 0
        %335 = vmatpush1.bf16.msra.mxu0 0
        %336 = vmatprep.subr.bf16.mxu0 0
        %337 = vmatpush1.bf16.msra.mxu0 0
        %338 = vmatprep.mubr.bf16.mxu0 0
        %339 = vmatmul.mubr.bf16.gmra.mrb[0].mxu0 %v206
        %v340 = vpop.f32.mrb[0].mxu0
        %v341 = vadd.f32 0.0, %v340
        %v342 = vpop.f32.mrb[0].mxu0
        %v343 = vadd.f32 0.0, %v342
        %v344 = vpop.f32.mrb[0].mxu0
        %v345 = vadd.f32 0.0, %v344
        %v346 = vpop.f32.mrb[0].mxu0
        %v347 = vadd.f32 0.0, %v346
        %348 = vmatprep.mubr.bf16.mxu0 0
        %349 = vmatmul.mubr.bf16.gmra.mrb[0].mxu0 %v207
        %v350 = vpop.f32.mrb[0].mxu0
        %v351 = vadd.f32 0.0, %v350
        %v352 = vpop.f32.mrb[0].mxu0
        %v353 = vadd.f32 0.0, %v352
        %v354 = vpop.f32.mrb[0].mxu0
        %v355 = vadd.f32 0.0, %v354
        %v356 = vpop.f32.mrb[0].mxu0
        %v357 = vadd.f32 0.0, %v356
        %358 = vmatprep.mubr.bf16.mxu0 0
        %359 = vmatmul.mubr.bf16.gmra.mrb[0].mxu0 %v208
        %v360 = vpop.f32.mrb[0].mxu0
        %v361 = vadd.f32 0.0, %v360
        %v362 = vpop.f32.mrb[0].mxu0
        %v363 = vadd.f32 0.0, %v362
        %v364 = vpop.f32.mrb[0].mxu0
        %v365 = vadd.f32 0.0, %v364
        %v366 = vpop.f32.mrb[0].mxu0
        %v367 = vadd.f32 0.0, %v366
        %368 = vmatprep.mubr.bf16.mxu0 0
        %369 = vmatmul.mubr.bf16.gmra.mrb[0].mxu0 %v209
        %v370 = vpop.f32.mrb[0].mxu0
        %v371 = vadd.f32 0.0, %v370
        %v372 = vpop.f32.mrb[0].mxu0
        %v373 = vadd.f32 0.0, %v372
        %v374 = vpop.f32.mrb[0].mxu0
        %v375 = vadd.f32 0.0, %v374
        %v376 = vpop.f32.mrb[0].mxu0
        %v377 = vadd.f32 0.0, %v376
        %378 = vdwg.mxu0
        %v379 = vmax.f32 %v341, %v351
        %v380 = vmax.f32 %v379, %v361
        %v381 = vmax.f32 %v380, %v371
        %v382 = vmax.f32 %v343, %v353
        %v383 = vmax.f32 %v382, %v363
        %v384 = vmax.f32 %v383, %v373
        %v385 = vmax.f32 %v345, %v355
        %v386 = vmax.f32 %v385, %v365
        %v387 = vmax.f32 %v386, %v375
        %v388 = vmax.f32 %v347, %v357
        %v389 = vmax.f32 %v388, %v367
        %v390 = vmax.f32 %v389, %v377
        %v391 = vpack.c.bf16 %v387, %v381
        %v392 = vpack.c.bf16 %v390, %v384
        %v395 = vunpack.c.l.b16 %v391
        %v396 = vunpack.c.l.b16 %v392
        %v397 = vunpack.c.h.b16 %v391
        %v398 = vunpack.c.h.b16 %v392
        %v399 = vpack.c.b16 %v396, %v395
        %v400 = vpack.c.b16 %v398, %v397
        %403 = vst [vmem:[%s194] sm:$0xff] %v399
        %404 = vst [vmem:[%s194 + $0x8] sm:$0xff] %v400
        %s405 = sand.u32 %s91, 1
        %s406 = scalar_lea.sflag [#allocation4], %s405
        %s407 = sand.u32 %s91, 1
        %s408 = smul.addr %s407, 16
        %s409 = scalar_lea.vmem [#allocation7], %s408
        // Predicated region
        $region37: #{tpu_custom_call.1} parent=27 // pred_check
          %p410 = pneg %p101
        $region38: #{tpu_custom_call.1} parent=27 // pred_check_branch
          %412 = sbr.rel (%p410) target = $region40
        $region39: #{tpu_custom_call.1} parent=27 // pred_region
          %s413 = smul.u32 2, %s25
          %s415 = ssub.s32 256, 256
          %416 = vsyncadd %s406, %s415
          %s417 = smul.addr %s413, 2
          %s418 = smul.addr %s24, 4
          %s419 = sadd.s32 %s417, %s418
          %s420 = smul.addr %s419, 64
          %s421 = scalar_lea.hbm %s2, %s420
          %s422 = sshll.u32 %s409, 4
          %s423 = int_to_ptr.vmem [resolvable:$true] %s422
          %428 = dma.vmem_to_hbm [thread:$0]  %s423, 256, %s421, %s406, 128, 128, 8
        $region40: #{tpu_custom_call.1} parent=27 // pred_fallthru
          _
      $region28: #{tpu_custom_call.1} parent=5 // pred_fallthru
        _
      %p429 = scmp.le.s32.totalorder 2, %s15
      // Predicated region
      $region41: #{tpu_custom_call.1} parent=5 // pred_check
        %p430 = pneg %p429
      $region42: #{tpu_custom_call.1} parent=5 // pred_check_branch
        %432 = sbr.rel (%p430) target = $region44
      $region43: #{tpu_custom_call.1} parent=5 // pred_region
        %s433 = ssub.s32 %s15, 2
        // Predicated region
        $region45: #{tpu_custom_call.1} parent=43 // pred_check
          %p434 = pneg %p107
        $region46: #{tpu_custom_call.1} parent=43 // pred_check_branch
          %436 = sbr.rel (%p434) target = $region48
        $region47: #{tpu_custom_call.1} parent=43 // pred_region
          %s437 = sand.u32 %s92, 1
          %s438 = scalar_lea.sflag [#allocation4], %s437
          %s439 = sand.u32 %s92, 1
          %s440 = smul.addr %s439, 16
          %s441 = scalar_lea.vmem [#allocation7], %s440
          %442 = dma.done %s438, 256
        $region48: #{tpu_custom_call.1} parent=43 // pred_fallthru
          _
      $region44: #{tpu_custom_call.1} parent=5 // pred_fallthru
        _
    $region6: #{tpu_custom_call.1} parent=1 // loop_footer
      %s19 = sadd.s32 1, %s15
    $region7: #{tpu_custom_call.1} parent=1 // loop_footer_branch
      %14 = sbr.rel target = $region3
    $region8: #{tpu_custom_call.1} parent=1 // loop_exit
      _
    %443 = vsyncpa [#allocation3], 1
    %s444 = scalar_lea.sflag [#allocation3], 1
    %445 = vsyncpa %s444, 1
    %446 = vsyncpa [#allocation6], 1
    %447 = vsyncpa [#allocation4], 1
    %s448 = scalar_lea.sflag [#allocation4], 1
    %449 = vsyncpa %s448, 1

</llo_original>
